<compile_context>
chip_gen: v7x
topology: tpu7x:2x2x1
jax: 0.10.0
libtpu: 0.0.40
codegen_flags: <defaults>
</compile_context>

<pallas_src>
import jax
import jax.numpy as jnp
from jax import lax
from jax.experimental import pallas as pl
from jax.experimental.pallas import tpu as pltpu


_CHUNK = 8                 # rows per packed (8, vocab) store on the resident path
_DMA_DEPTH = 8             # in-flight row DMAs on the HBM-gather path
_MAX_UNROLLED_CHUNKS = 16  # static unroll threshold for the resident chunk loop


def _round_up(x, m):
    return ((x + m - 1) // m) * m


def _vmem_capacity_bytes():
    try:
        return int(pltpu.get_tpu_info().vmem_capacity_bytes)
    except Exception:
        return 64 * 1024 * 1024  # conservative: v7x per-TensorCore VMEM


def _make_resident_kernel(tile_n):
    n_chunks = tile_n // _CHUNK

    def gather_chunk(idx_ref, table_ref, out_ref, base, off):
        # 8 dynamic-sublane row loads packed into one unmasked, lane-dense
        # (8, vocab) store -> 1 vst per 8 rows instead of 8 masked
        # single-sublane stores (the vst slot is the binding slot on v5e).
        rows = [table_ref[pl.ds(idx_ref[base + off + j], 1), :]
                for j in range(_CHUNK)]
        out_ref[pl.ds(off, _CHUNK), :] = jnp.concatenate(rows, axis=0)

    def kernel(idx_ref, table_ref, out_ref):
        # idx_ref:   (n_pad,)        int32  SMEM (scalar prefetch)
        # table_ref: (vocab, vocab)  VMEM, resident (constant index_map)
        # out_ref:   (tile_n, vocab) VMEM output block (lane-dense)
        base = pl.program_id(0) * tile_n
        if n_chunks <= _MAX_UNROLLED_CHUNKS:
            # Short loop: static unroll, static store offsets.
            for c in range(n_chunks):
                gather_chunk(idx_ref, table_ref, out_ref, base, c * _CHUNK)
        else:
            # Long loop: bounded code size; keep stores sublane-aligned.
            def body(c, carry):
                off = pl.multiple_of(c * _CHUNK, _CHUNK)
                gather_chunk(idx_ref, table_ref, out_ref, base, off)
                return carry
            lax.fori_loop(0, n_chunks, body, 0)

    return kernel


def _make_dma_gather_kernel(tile_n, depth):
    def kernel(idx_ref, table_hbm, out_ref, buf, sems):
        # idx_ref:   (n_pad,)        int32 SMEM (scalar prefetch)
        # table_hbm: (vocab, vocab)  HBM (pl.ANY) -- never copied wholesale
        # out_ref:   (tile_n, vocab) VMEM output block
        # buf:       (tile_n, vocab) VMEM landing buffer for the row DMAs
        # sems:      (depth,)        DMA semaphores (rolling window)
        base = pl.program_id(0) * tile_n

        def start_row(i):
            tok = idx_ref[base + i]
            pltpu.make_async_copy(
                table_hbm.at[pl.ds(tok, 1), :],
                buf.at[pl.ds(i, 1), :],
                sems.at[i % depth],
            ).start()

        def wait_row(i):
            # Size-only descriptor: the wait just needs the sem + copy size.
            pltpu.make_async_copy(
                table_hbm.at[pl.ds(0, 1), :],
                buf.at[pl.ds(i, 1), :],
                sems.at[i % depth],
            ).wait()

        for i in range(depth):          # prime the window
            start_row(i)
        for i in range(tile_n):         # rolling window: `depth` rows in flight
            wait_row(i)
            if i + depth < tile_n:
                start_row(i + depth)

        out_ref[...] = buf[...]         # single lane-dense block store

    return kernel


def bigram_forward(indices, table, *, tile_n=None, force_path=None):
    """
    indices: (b, t) integer token ids
    table:   (vocab, vocab) float  (nn.Embedding weight)
    returns: (b, t, vocab)  embeddings / logits:
             out[b, t, :] = table[indices[b, t], :]
    """
    b, t = indices.shape
    vocab = table.shape[0]
    assert table.shape == (vocab, vocab)
    n = b * t

    dtype_bytes = jnp.dtype(table.dtype).itemsize
    row_bytes = vocab * dtype_bytes
    table_bytes = vocab * vocab * dtype_bytes
    capacity = _vmem_capacity_bytes()

    n8 = _round_up(n, 8)

    # Default tile sizes (review item 1: big tiles; ~0.35us per-grid-step
    # overhead dominates tiny tiles).  The DMA path caps the tile to keep the
    # unrolled per-row DMA schedule bounded.
    resident_tile = min(n8, max(8, min(1024, (4 << 20) // row_bytes) // 8 * 8))
    dma_tile = min(n8, max(8, min(128, (2 << 20) // row_bytes) // 8 * 8))

    # Trace-time dispatch (review items 4, 7): resident path streams the whole
    # V^2 table HBM->VMEM (per core under "parallel" on v7x); the DMA-gather
    # path moves only ~2*N*V bytes.  Pick resident only when N >> V and the
    # single-buffered table + double-buffered output tile fit in VMEM.
    resident_fits = (
        table_bytes + 2 * resident_tile * row_bytes + (4 << 20) <= capacity)
    if force_path is None:
        path = "resident" if (resident_fits and n > 2 * vocab) else "dma"
    else:
        path = force_path
    assert path in ("resident", "dma")

    if tile_n is None:
        tile_n = resident_tile if path == "resident" else dma_tile
    tile_n = max(8, _round_up(min(tile_n, n8), 8))
    n_pad = _round_up(n, tile_n)
    grid = (n_pad // tile_n,)
    tile_bytes = tile_n * row_bytes

    idx_flat = indices.reshape(n).astype(jnp.int32)
    # NOTE: PyTorch nn.Embedding raises on out-of-range ids; we clamp instead
    # (no runtime bounds check on the in-kernel gather).  Semantics only
    # differ for invalid inputs.
    idx_flat = jnp.clip(idx_flat, 0, vocab - 1)
    if n_pad != n:
        idx_flat = jnp.pad(idx_flat, (0, n_pad - n))

    out_shape = jax.ShapeDtypeStruct((n_pad, vocab), table.dtype)
    out_spec = pl.BlockSpec((tile_n, vocab), lambda i, idx: (i, 0))

    if path == "resident":
        # Review item 5: only shard the N axis across TensorCores when the
        # per-core table re-fetch is amortized by enough gathered rows.
        semantics = "parallel" if n_pad > 2 * vocab else "arbitrary"
        # Review item 3: explicit scoped-VMEM limit sized from the footprint
        # (2x table so the double-buffered fallback below still compiles).
        vmem_limit = int(min(capacity,
                             2 * table_bytes + 2 * tile_bytes + (8 << 20)))
        kernel = _make_resident_kernel(tile_n)

        def build(single_buffer_table):
            table_idx_map = lambda i, idx: (0, 0)
            if single_buffer_table:
                # Review item 2: constant-index table does not need double
                # buffering -> halve its VMEM footprint.
                table_spec = pl.BlockSpec((vocab, vocab), table_idx_map,
                                          pipeline_mode=pl.Buffered(1))
            else:
                table_spec = pl.BlockSpec((vocab, vocab), table_idx_map)
            return pl.pallas_call(
                kernel,
                out_shape=out_shape,
                grid_spec=pltpu.PrefetchScalarGridSpec(
                    num_scalar_prefetch=1,
                    grid=grid,
                    in_specs=[table_spec],
                    out_specs=out_spec,
                ),
                compiler_params=pltpu.CompilerParams(
                    dimension_semantics=(semantics,),
                    vmem_limit_bytes=vmem_limit,
                ),
            )

        try:
            out = build(True)(idx_flat, table)
        except Exception:
            # Fallback for jax builds without BlockSpec pipeline_mode support:
            # default (double-buffered) constant-index table.
            out = build(False)(idx_flat, table)

    else:  # "dma" gather path: table stays in HBM, row DMAs driven by SMEM ids
        depth = min(_DMA_DEPTH, tile_n)
        vmem_limit = int(min(capacity, 3 * tile_bytes + (8 << 20)))
        out = pl.pallas_call(
            _make_dma_gather_kernel(tile_n, depth),
            out_shape=out_shape,
            grid_spec=pltpu.PrefetchScalarGridSpec(
                num_scalar_prefetch=1,
                grid=grid,
                in_specs=[pl.BlockSpec(memory_space=pl.ANY)],  # raw HBM table
                out_specs=out_spec,
                scratch_shapes=[
                    pltpu.VMEM((tile_n, vocab), table.dtype),
                    pltpu.SemaphoreType.DMA((depth,)),
                ],
            ),
            compiler_params=pltpu.CompilerParams(
                dimension_semantics=("parallel",),  # 2-TC sharding is pure win here
                vmem_limit_bytes=vmem_limit,
            ),
        )(idx_flat, table)

    if n_pad != n:
        out = out[:n]
    return out.reshape(b, t, vocab)


if __name__ == "__main__":
    # Small shapes consistent with the module: batch=2, seq=8, vocab=128.
    b, t, vocab_s = 2, 8, 128

    key = jax.random.PRNGKey(0)
    k_tab, k_idx, k_idx2, k_idx3 = jax.random.split(key, 4)

    # nn.Embedding default init is N(0, 1).
    table = jax.random.normal(k_tab, (vocab_s, vocab_s), dtype=jnp.float32)
    indices = jax.random.randint(k_idx, (b, t), 0, vocab_s, dtype=jnp.int32)
    ref = table[indices]  # plain-JAX reference gather (== torch nn.Embedding)

    # Small-batch regime (N << V): dispatches to the HBM DMA-gather path.
    out = jax.block_until_ready(bigram_forward(indices, table))
    assert out.shape == (b, t, vocab_s)
    assert jnp.allclose(out, ref), "dma-gather path mismatch"

    # Force the resident-table path on the same inputs.
    out_res = jax.block_until_ready(
        bigram_forward(indices, table, force_path="resident"))
    assert jnp.allclose(out_res, ref), "resident path mismatch"

    # Larger N (> 2*vocab): dispatches to the resident path (fori-loop chunks);
    # also exercise the multi-tile DMA-gather path on the same inputs.
    b2, t2 = 4, 96
    idx2 = jax.random.randint(k_idx2, (b2, t2), 0, vocab_s, dtype=jnp.int32)
    ref2 = table[idx2]
    out2 = jax.block_until_ready(bigram_forward(idx2, table))
    assert jnp.allclose(out2, ref2), "resident (large-N) path mismatch"
    out2_dma = jax.block_until_ready(
        bigram_forward(idx2, table, force_path="dma"))
    assert jnp.allclose(out2_dma, ref2), "dma-gather (multi-tile) path mismatch"

    # Non-multiple-of-8 N exercises the padded tail.
    b3, t3 = 3, 7
    idx3 = jax.random.randint(k_idx3, (b3, t3), 0, vocab_s, dtype=jnp.int32)
    out3 = jax.block_until_ready(bigram_forward(idx3, table))
    assert jnp.allclose(out3, table[idx3]), "padded-tail mismatch"

    # TODO(synk): generate() (autoregressive multinomial-sampling loop) is
    # host-side control flow around forward(); not part of the kernel.
    print("KERNEL_OK")
</pallas_src>

<mosaic_0001>
module attributes {stable_mosaic.version = 11 : i64} {
  func.func @kernel(%arg0: i32, %arg1: memref<16xi32, #tpu.memory_space<smem>>, %arg2: memref<128x128xf32, #tpu.memory_space<any>>, %arg3: memref<16x128xf32, #tpu.memory_space<vmem>>, %arg4: memref<16x128xf32, #tpu.memory_space<vmem>>, %arg5: memref<8x!tpu.dma_semaphore, #tpu.memory_space<semaphore_mem>>) attributes {dimension_semantics = [#tpu.dimension_semantics<parallel>], iteration_bounds = array<i64: 1>, scalar_prefetch = 1 : i64, scratch_operands = 2 : i64, tpu.core_type = #tpu.core_type<tc>, window_params = [{}, {transform_indices = @transform_1, window_bounds = array<i64: 16, 128>}]} {
    %c16_i32 = arith.constant 16 : i32
    %0 = arith.muli %arg0, %c16_i32 : i32
    %c0_i32 = arith.constant 0 : i32
    %1 = arith.addi %0, %c0_i32 : i32
    %2 = arith.index_cast %1 : i32 to index
    %3 = memref.load %arg1[%2] : memref<16xi32, #tpu.memory_space<smem>>
    %c0_i32_0 = arith.constant 0 : i32
    %c0_i32_1 = arith.constant 0 : i32
    %4 = tpu.memref_slice %arg2[%3, %c0_i32_1] : memref<128x128xf32, #tpu.memory_space<any>> -> memref<1x128xf32, #tpu.memory_space<any>>
    %c0_i32_2 = arith.constant 0 : i32
    %c0_i32_3 = arith.constant 0 : i32
    %5 = tpu.memref_slice %arg4[%c0_i32_2, %c0_i32_3] : memref<16x128xf32, #tpu.memory_space<vmem>> -> memref<1x128xf32, #tpu.memory_space<vmem>>
    %6 = tpu.memref_slice %arg5[%c0_i32_0] : memref<8x!tpu.dma_semaphore, #tpu.memory_space<semaphore_mem>> -> memref<1x!tpu.dma_semaphore, #tpu.memory_space<semaphore_mem>>
    %7 = tpu.memref_squeeze %6 : memref<1x!tpu.dma_semaphore, #tpu.memory_space<semaphore_mem>> -> memref<!tpu.dma_semaphore, #tpu.memory_space<semaphore_mem>>
    tpu.enqueue_dma source(%4 : memref<1x128xf32, #tpu.memory_space<any>>) target(%5 : memref<1x128xf32, #tpu.memory_space<vmem>>) target_semaphore(%7 : memref<!tpu.dma_semaphore, #tpu.memory_space<semaphore_mem>>)
    %c1_i32 = arith.constant 1 : i32
    %8 = arith.addi %0, %c1_i32 : i32
    %9 = arith.index_cast %8 : i32 to index
    %10 = memref.load %arg1[%9] : memref<16xi32, #tpu.memory_space<smem>>
    %c1_i32_4 = arith.constant 1 : i32
    %c0_i32_5 = arith.constant 0 : i32
    %11 = tpu.memref_slice %arg2[%10, %c0_i32_5] : memref<128x128xf32, #tpu.memory_space<any>> -> memref<1x128xf32, #tpu.memory_space<any>>
    %c1_i32_6 = arith.constant 1 : i32
    %c0_i32_7 = arith.constant 0 : i32
    %12 = tpu.memref_slice %arg4[%c1_i32_6, %c0_i32_7] : memref<16x128xf32, #tpu.memory_space<vmem>> -> memref<1x128xf32, #tpu.memory_space<vmem>>
    %13 = tpu.memref_slice %arg5[%c1_i32_4] : memref<8x!tpu.dma_semaphore, #tpu.memory_space<semaphore_mem>> -> memref<1x!tpu.dma_semaphore, #tpu.memory_space<semaphore_mem>>
    %14 = tpu.memref_squeeze %13 : memref<1x!tpu.dma_semaphore, #tpu.memory_space<semaphore_mem>> -> memref<!tpu.dma_semaphore, #tpu.memory_space<semaphore_mem>>
    tpu.enqueue_dma source(%11 : memref<1x128xf32, #tpu.memory_space<any>>) target(%12 : memref<1x128xf32, #tpu.memory_space<vmem>>) target_semaphore(%14 : memref<!tpu.dma_semaphore, #tpu.memory_space<semaphore_mem>>)
    %c2_i32 = arith.constant 2 : i32
    %15 = arith.addi %0, %c2_i32 : i32
    %16 = arith.index_cast %15 : i32 to index
    %17 = memref.load %arg1[%16] : memref<16xi32, #tpu.memory_space<smem>>
    %c2_i32_8 = arith.constant 2 : i32
    %c0_i32_9 = arith.constant 0 : i32
    %18 = tpu.memref_slice %arg2[%17, %c0_i32_9] : memref<128x128xf32, #tpu.memory_space<any>> -> memref<1x128xf32, #tpu.memory_space<any>>
    %c2_i32_10 = arith.constant 2 : i32
    %c0_i32_11 = arith.constant 0 : i32
    %19 = tpu.memref_slice %arg4[%c2_i32_10, %c0_i32_11] : memref<16x128xf32, #tpu.memory_space<vmem>> -> memref<1x128xf32, #tpu.memory_space<vmem>>
    %20 = tpu.memref_slice %arg5[%c2_i32_8] : memref<8x!tpu.dma_semaphore, #tpu.memory_space<semaphore_mem>> -> memref<1x!tpu.dma_semaphore, #tpu.memory_space<semaphore_mem>>
    %21 = tpu.memref_squeeze %20 : memref<1x!tpu.dma_semaphore, #tpu.memory_space<semaphore_mem>> -> memref<!tpu.dma_semaphore, #tpu.memory_space<semaphore_mem>>
    tpu.enqueue_dma source(%18 : memref<1x128xf32, #tpu.memory_space<any>>) target(%19 : memref<1x128xf32, #tpu.memory_space<vmem>>) target_semaphore(%21 : memref<!tpu.dma_semaphore, #tpu.memory_space<semaphore_mem>>)
    %c3_i32 = arith.constant 3 : i32
    %22 = arith.addi %0, %c3_i32 : i32
    %23 = arith.index_cast %22 : i32 to index
    %24 = memref.load %arg1[%23] : memref<16xi32, #tpu.memory_space<smem>>
    %c3_i32_12 = arith.constant 3 : i32
    %c0_i32_13 = arith.constant 0 : i32
    %25 = tpu.memref_slice %arg2[%24, %c0_i32_13] : memref<128x128xf32, #tpu.memory_space<any>> -> memref<1x128xf32, #tpu.memory_space<any>>
    %c3_i32_14 = arith.constant 3 : i32
    %c0_i32_15 = arith.constant 0 : i32
    %26 = tpu.memref_slice %arg4[%c3_i32_14, %c0_i32_15] : memref<16x128xf32, #tpu.memory_space<vmem>> -> memref<1x128xf32, #tpu.memory_space<vmem>>
    %27 = tpu.memref_slice %arg5[%c3_i32_12] : memref<8x!tpu.dma_semaphore, #tpu.memory_space<semaphore_mem>> -> memref<1x!tpu.dma_semaphore, #tpu.memory_space<semaphore_mem>>
    %28 = tpu.memref_squeeze %27 : memref<1x!tpu.dma_semaphore, #tpu.memory_space<semaphore_mem>> -> memref<!tpu.dma_semaphore, #tpu.memory_space<semaphore_mem>>
    tpu.enqueue_dma source(%25 : memref<1x128xf32, #tpu.memory_space<any>>) target(%26 : memref<1x128xf32, #tpu.memory_space<vmem>>) target_semaphore(%28 : memref<!tpu.dma_semaphore, #tpu.memory_space<semaphore_mem>>)
    %c4_i32 = arith.constant 4 : i32
    %29 = arith.addi %0, %c4_i32 : i32
    %30 = arith.index_cast %29 : i32 to index
    %31 = memref.load %arg1[%30] : memref<16xi32, #tpu.memory_space<smem>>
    %c4_i32_16 = arith.constant 4 : i32
    %c0_i32_17 = arith.constant 0 : i32
    %32 = tpu.memref_slice %arg2[%31, %c0_i32_17] : memref<128x128xf32, #tpu.memory_space<any>> -> memref<1x128xf32, #tpu.memory_space<any>>
    %c4_i32_18 = arith.constant 4 : i32
    %c0_i32_19 = arith.constant 0 : i32
    %33 = tpu.memref_slice %arg4[%c4_i32_18, %c0_i32_19] : memref<16x128xf32, #tpu.memory_space<vmem>> -> memref<1x128xf32, #tpu.memory_space<vmem>>
    %34 = tpu.memref_slice %arg5[%c4_i32_16] : memref<8x!tpu.dma_semaphore, #tpu.memory_space<semaphore_mem>> -> memref<1x!tpu.dma_semaphore, #tpu.memory_space<semaphore_mem>>
    %35 = tpu.memref_squeeze %34 : memref<1x!tpu.dma_semaphore, #tpu.memory_space<semaphore_mem>> -> memref<!tpu.dma_semaphore, #tpu.memory_space<semaphore_mem>>
    tpu.enqueue_dma source(%32 : memref<1x128xf32, #tpu.memory_space<any>>) target(%33 : memref<1x128xf32, #tpu.memory_space<vmem>>) target_semaphore(%35 : memref<!tpu.dma_semaphore, #tpu.memory_space<semaphore_mem>>)
    %c5_i32 = arith.constant 5 : i32
    %36 = arith.addi %0, %c5_i32 : i32
    %37 = arith.index_cast %36 : i32 to index
    %38 = memref.load %arg1[%37] : memref<16xi32, #tpu.memory_space<smem>>
    %c5_i32_20 = arith.constant 5 : i32
    %c0_i32_21 = arith.constant 0 : i32
    %39 = tpu.memref_slice %arg2[%38, %c0_i32_21] : memref<128x128xf32, #tpu.memory_space<any>> -> memref<1x128xf32, #tpu.memory_space<any>>
    %c5_i32_22 = arith.constant 5 : i32
    %c0_i32_23 = arith.constant 0 : i32
    %40 = tpu.memref_slice %arg4[%c5_i32_22, %c0_i32_23] : memref<16x128xf32, #tpu.memory_space<vmem>> -> memref<1x128xf32, #tpu.memory_space<vmem>>
    %41 = tpu.memref_slice %arg5[%c5_i32_20] : memref<8x!tpu.dma_semaphore, #tpu.memory_space<semaphore_mem>> -> memref<1x!tpu.dma_semaphore, #tpu.memory_space<semaphore_mem>>
    %42 = tpu.memref_squeeze %41 : memref<1x!tpu.dma_semaphore, #tpu.memory_space<semaphore_mem>> -> memref<!tpu.dma_semaphore, #tpu.memory_space<semaphore_mem>>
    tpu.enqueue_dma source(%39 : memref<1x128xf32, #tpu.memory_space<any>>) target(%40 : memref<1x128xf32, #tpu.memory_space<vmem>>) target_semaphore(%42 : memref<!tpu.dma_semaphore, #tpu.memory_space<semaphore_mem>>)
    %c6_i32 = arith.constant 6 : i32
    %43 = arith.addi %0, %c6_i32 : i32
    %44 = arith.index_cast %43 : i32 to index
    %45 = memref.load %arg1[%44] : memref<16xi32, #tpu.memory_space<smem>>
    %c6_i32_24 = arith.constant 6 : i32
    %c0_i32_25 = arith.constant 0 : i32
    %46 = tpu.memref_slice %arg2[%45, %c0_i32_25] : memref<128x128xf32, #tpu.memory_space<any>> -> memref<1x128xf32, #tpu.memory_space<any>>
    %c6_i32_26 = arith.constant 6 : i32
    %c0_i32_27 = arith.constant 0 : i32
    %47 = tpu.memref_slice %arg4[%c6_i32_26, %c0_i32_27] : memref<16x128xf32, #tpu.memory_space<vmem>> -> memref<1x128xf32, #tpu.memory_space<vmem>>
    %48 = tpu.memref_slice %arg5[%c6_i32_24] : memref<8x!tpu.dma_semaphore, #tpu.memory_space<semaphore_mem>> -> memref<1x!tpu.dma_semaphore, #tpu.memory_space<semaphore_mem>>
    %49 = tpu.memref_squeeze %48 : memref<1x!tpu.dma_semaphore, #tpu.memory_space<semaphore_mem>> -> memref<!tpu.dma_semaphore, #tpu.memory_space<semaphore_mem>>
    tpu.enqueue_dma source(%46 : memref<1x128xf32, #tpu.memory_space<any>>) target(%47 : memref<1x128xf32, #tpu.memory_space<vmem>>) target_semaphore(%49 : memref<!tpu.dma_semaphore, #tpu.memory_space<semaphore_mem>>)
    %c7_i32 = arith.constant 7 : i32
    %50 = arith.addi %0, %c7_i32 : i32
    %51 = arith.index_cast %50 : i32 to index
    %52 = memref.load %arg1[%51] : memref<16xi32, #tpu.memory_space<smem>>
    %c7_i32_28 = arith.constant 7 : i32
    %c0_i32_29 = arith.constant 0 : i32
    %53 = tpu.memref_slice %arg2[%52, %c0_i32_29] : memref<128x128xf32, #tpu.memory_space<any>> -> memref<1x128xf32, #tpu.memory_space<any>>
    %c7_i32_30 = arith.constant 7 : i32
    %c0_i32_31 = arith.constant 0 : i32
    %54 = tpu.memref_slice %arg4[%c7_i32_30, %c0_i32_31] : memref<16x128xf32, #tpu.memory_space<vmem>> -> memref<1x128xf32, #tpu.memory_space<vmem>>
    %55 = tpu.memref_slice %arg5[%c7_i32_28] : memref<8x!tpu.dma_semaphore, #tpu.memory_space<semaphore_mem>> -> memref<1x!tpu.dma_semaphore, #tpu.memory_space<semaphore_mem>>
    %56 = tpu.memref_squeeze %55 : memref<1x!tpu.dma_semaphore, #tpu.memory_space<semaphore_mem>> -> memref<!tpu.dma_semaphore, #tpu.memory_space<semaphore_mem>>
    tpu.enqueue_dma source(%53 : memref<1x128xf32, #tpu.memory_space<any>>) target(%54 : memref<1x128xf32, #tpu.memory_space<vmem>>) target_semaphore(%56 : memref<!tpu.dma_semaphore, #tpu.memory_space<semaphore_mem>>)
    %c0_i32_32 = arith.constant 0 : i32
    %c0_i32_33 = arith.constant 0 : i32
    %c0_i32_34 = arith.constant 0 : i32
    %57 = tpu.memref_slice %arg2[%c0_i32_33, %c0_i32_34] : memref<128x128xf32, #tpu.memory_space<any>> -> memref<1x128xf32, #tpu.memory_space<any>>
    %c0_i32_35 = arith.constant 0 : i32
    %c0_i32_36 = arith.constant 0 : i32
    %58 = tpu.memref_slice %arg4[%c0_i32_35, %c0_i32_36] : memref<16x128xf32, #tpu.memory_space<vmem>> -> memref<1x128xf32, #tpu.memory_space<vmem>>
    %59 = tpu.memref_slice %arg5[%c0_i32_32] : memref<8x!tpu.dma_semaphore, #tpu.memory_space<semaphore_mem>> -> memref<1x!tpu.dma_semaphore, #tpu.memory_space<semaphore_mem>>
    %60 = tpu.memref_squeeze %59 : memref<1x!tpu.dma_semaphore, #tpu.memory_space<semaphore_mem>> -> memref<!tpu.dma_semaphore, #tpu.memory_space<semaphore_mem>>
    tpu.wait_dma2 semaphore(%60 : memref<!tpu.dma_semaphore, #tpu.memory_space<semaphore_mem>>) src(%57 : memref<1x128xf32, #tpu.memory_space<any>>) dst(%58 : memref<1x128xf32, #tpu.memory_space<vmem>>)
    %c8_i32 = arith.constant 8 : i32
    %61 = arith.addi %0, %c8_i32 : i32
    %62 = arith.index_cast %61 : i32 to index
    %63 = memref.load %arg1[%62] : memref<16xi32, #tpu.memory_space<smem>>
    %c0_i32_37 = arith.constant 0 : i32
    %c0_i32_38 = arith.constant 0 : i32
    %64 = tpu.memref_slice %arg2[%63, %c0_i32_38] : memref<128x128xf32, #tpu.memory_space<any>> -> memref<1x128xf32, #tpu.memory_space<any>>
    %c8_i32_39 = arith.constant 8 : i32
    %c0_i32_40 = arith.constant 0 : i32
    %65 = tpu.memref_slice %arg4[%c8_i32_39, %c0_i32_40] : memref<16x128xf32, #tpu.memory_space<vmem>> -> memref<1x128xf32, #tpu.memory_space<vmem>>
    %66 = tpu.memref_slice %arg5[%c0_i32_37] : memref<8x!tpu.dma_semaphore, #tpu.memory_space<semaphore_mem>> -> memref<1x!tpu.dma_semaphore, #tpu.memory_space<semaphore_mem>>
    %67 = tpu.memref_squeeze %66 : memref<1x!tpu.dma_semaphore, #tpu.memory_space<semaphore_mem>> -> memref<!tpu.dma_semaphore, #tpu.memory_space<semaphore_mem>>
    tpu.enqueue_dma source(%64 : memref<1x128xf32, #tpu.memory_space<any>>) target(%65 : memref<1x128xf32, #tpu.memory_space<vmem>>) target_semaphore(%67 : memref<!tpu.dma_semaphore, #tpu.memory_space<semaphore_mem>>)
    %c1_i32_41 = arith.constant 1 : i32
    %c0_i32_42 = arith.constant 0 : i32
    %c0_i32_43 = arith.constant 0 : i32
    %68 = tpu.memref_slice %arg2[%c0_i32_42, %c0_i32_43] : memref<128x128xf32, #tpu.memory_space<any>> -> memref<1x128xf32, #tpu.memory_space<any>>
    %c1_i32_44 = arith.constant 1 : i32
    %c0_i32_45 = arith.constant 0 : i32
    %69 = tpu.memref_slice %arg4[%c1_i32_44, %c0_i32_45] : memref<16x128xf32, #tpu.memory_space<vmem>> -> memref<1x128xf32, #tpu.memory_space<vmem>>
    %70 = tpu.memref_slice %arg5[%c1_i32_41] : memref<8x!tpu.dma_semaphore, #tpu.memory_space<semaphore_mem>> -> memref<1x!tpu.dma_semaphore, #tpu.memory_space<semaphore_mem>>
    %71 = tpu.memref_squeeze %70 : memref<1x!tpu.dma_semaphore, #tpu.memory_space<semaphore_mem>> -> memref<!tpu.dma_semaphore, #tpu.memory_space<semaphore_mem>>
    tpu.wait_dma2 semaphore(%71 : memref<!tpu.dma_semaphore, #tpu.memory_space<semaphore_mem>>) src(%68 : memref<1x128xf32, #tpu.memory_space<any>>) dst(%69 : memref<1x128xf32, #tpu.memory_space<vmem>>)
    %c9_i32 = arith.constant 9 : i32
    %72 = arith.addi %0, %c9_i32 : i32
    %73 = arith.index_cast %72 : i32 to index
    %74 = memref.load %arg1[%73] : memref<16xi32, #tpu.memory_space<smem>>
    %c1_i32_46 = arith.constant 1 : i32
    %c0_i32_47 = arith.constant 0 : i32
    %75 = tpu.memref_slice %arg2[%74, %c0_i32_47] : memref<128x128xf32, #tpu.memory_space<any>> -> memref<1x128xf32, #tpu.memory_space<any>>
    %c9_i32_48 = arith.constant 9 : i32
    %c0_i32_49 = arith.constant 0 : i32
    %76 = tpu.memref_slice %arg4[%c9_i32_48, %c0_i32_49] : memref<16x128xf32, #tpu.memory_space<vmem>> -> memref<1x128xf32, #tpu.memory_space<vmem>>
    %77 = tpu.memref_slice %arg5[%c1_i32_46] : memref<8x!tpu.dma_semaphore, #tpu.memory_space<semaphore_mem>> -> memref<1x!tpu.dma_semaphore, #tpu.memory_space<semaphore_mem>>
    %78 = tpu.memref_squeeze %77 : memref<1x!tpu.dma_semaphore, #tpu.memory_space<semaphore_mem>> -> memref<!tpu.dma_semaphore, #tpu.memory_space<semaphore_mem>>
    tpu.enqueue_dma source(%75 : memref<1x128xf32, #tpu.memory_space<any>>) target(%76 : memref<1x128xf32, #tpu.memory_space<vmem>>) target_semaphore(%78 : memref<!tpu.dma_semaphore, #tpu.memory_space<semaphore_mem>>)
    %c2_i32_50 = arith.constant 2 : i32
    %c0_i32_51 = arith.constant 0 : i32
    %c0_i32_52 = arith.constant 0 : i32
    %79 = tpu.memref_slice %arg2[%c0_i32_51, %c0_i32_52] : memref<128x128xf32, #tpu.memory_space<any>> -> memref<1x128xf32, #tpu.memory_space<any>>
    %c2_i32_53 = arith.constant 2 : i32
    %c0_i32_54 = arith.constant 0 : i32
    %80 = tpu.memref_slice %arg4[%c2_i32_53, %c0_i32_54] : memref<16x128xf32, #tpu.memory_space<vmem>> -> memref<1x128xf32, #tpu.memory_space<vmem>>
    %81 = tpu.memref_slice %arg5[%c2_i32_50] : memref<8x!tpu.dma_semaphore, #tpu.memory_space<semaphore_mem>> -> memref<1x!tpu.dma_semaphore, #tpu.memory_space<semaphore_mem>>
    %82 = tpu.memref_squeeze %81 : memref<1x!tpu.dma_semaphore, #tpu.memory_space<semaphore_mem>> -> memref<!tpu.dma_semaphore, #tpu.memory_space<semaphore_mem>>
    tpu.wait_dma2 semaphore(%82 : memref<!tpu.dma_semaphore, #tpu.memory_space<semaphore_mem>>) src(%79 : memref<1x128xf32, #tpu.memory_space<any>>) dst(%80 : memref<1x128xf32, #tpu.memory_space<vmem>>)
    %c10_i32 = arith.constant 10 : i32
    %83 = arith.addi %0, %c10_i32 : i32
    %84 = arith.index_cast %83 : i32 to index
    %85 = memref.load %arg1[%84] : memref<16xi32, #tpu.memory_space<smem>>
    %c2_i32_55 = arith.constant 2 : i32
    %c0_i32_56 = arith.constant 0 : i32
    %86 = tpu.memref_slice %arg2[%85, %c0_i32_56] : memref<128x128xf32, #tpu.memory_space<any>> -> memref<1x128xf32, #tpu.memory_space<any>>
    %c10_i32_57 = arith.constant 10 : i32
    %c0_i32_58 = arith.constant 0 : i32
    %87 = tpu.memref_slice %arg4[%c10_i32_57, %c0_i32_58] : memref<16x128xf32, #tpu.memory_space<vmem>> -> memref<1x128xf32, #tpu.memory_space<vmem>>
    %88 = tpu.memref_slice %arg5[%c2_i32_55] : memref<8x!tpu.dma_semaphore, #tpu.memory_space<semaphore_mem>> -> memref<1x!tpu.dma_semaphore, #tpu.memory_space<semaphore_mem>>
    %89 = tpu.memref_squeeze %88 : memref<1x!tpu.dma_semaphore, #tpu.memory_space<semaphore_mem>> -> memref<!tpu.dma_semaphore, #tpu.memory_space<semaphore_mem>>
    tpu.enqueue_dma source(%86 : memref<1x128xf32, #tpu.memory_space<any>>) target(%87 : memref<1x128xf32, #tpu.memory_space<vmem>>) target_semaphore(%89 : memref<!tpu.dma_semaphore, #tpu.memory_space<semaphore_mem>>)
    %c3_i32_59 = arith.constant 3 : i32
    %c0_i32_60 = arith.constant 0 : i32
    %c0_i32_61 = arith.constant 0 : i32
    %90 = tpu.memref_slice %arg2[%c0_i32_60, %c0_i32_61] : memref<128x128xf32, #tpu.memory_space<any>> -> memref<1x128xf32, #tpu.memory_space<any>>
    %c3_i32_62 = arith.constant 3 : i32
    %c0_i32_63 = arith.constant 0 : i32
    %91 = tpu.memref_slice %arg4[%c3_i32_62, %c0_i32_63] : memref<16x128xf32, #tpu.memory_space<vmem>> -> memref<1x128xf32, #tpu.memory_space<vmem>>
    %92 = tpu.memref_slice %arg5[%c3_i32_59] : memref<8x!tpu.dma_semaphore, #tpu.memory_space<semaphore_mem>> -> memref<1x!tpu.dma_semaphore, #tpu.memory_space<semaphore_mem>>
    %93 = tpu.memref_squeeze %92 : memref<1x!tpu.dma_semaphore, #tpu.memory_space<semaphore_mem>> -> memref<!tpu.dma_semaphore, #tpu.memory_space<semaphore_mem>>
    tpu.wait_dma2 semaphore(%93 : memref<!tpu.dma_semaphore, #tpu.memory_space<semaphore_mem>>) src(%90 : memref<1x128xf32, #tpu.memory_space<any>>) dst(%91 : memref<1x128xf32, #tpu.memory_space<vmem>>)
    %c11_i32 = arith.constant 11 : i32
    %94 = arith.addi %0, %c11_i32 : i32
    %95 = arith.index_cast %94 : i32 to index
    %96 = memref.load %arg1[%95] : memref<16xi32, #tpu.memory_space<smem>>
    %c3_i32_64 = arith.constant 3 : i32
    %c0_i32_65 = arith.constant 0 : i32
    %97 = tpu.memref_slice %arg2[%96, %c0_i32_65] : memref<128x128xf32, #tpu.memory_space<any>> -> memref<1x128xf32, #tpu.memory_space<any>>
    %c11_i32_66 = arith.constant 11 : i32
    %c0_i32_67 = arith.constant 0 : i32
    %98 = tpu.memref_slice %arg4[%c11_i32_66, %c0_i32_67] : memref<16x128xf32, #tpu.memory_space<vmem>> -> memref<1x128xf32, #tpu.memory_space<vmem>>
    %99 = tpu.memref_slice %arg5[%c3_i32_64] : memref<8x!tpu.dma_semaphore, #tpu.memory_space<semaphore_mem>> -> memref<1x!tpu.dma_semaphore, #tpu.memory_space<semaphore_mem>>
    %100 = tpu.memref_squeeze %99 : memref<1x!tpu.dma_semaphore, #tpu.memory_space<semaphore_mem>> -> memref<!tpu.dma_semaphore, #tpu.memory_space<semaphore_mem>>
    tpu.enqueue_dma source(%97 : memref<1x128xf32, #tpu.memory_space<any>>) target(%98 : memref<1x128xf32, #tpu.memory_space<vmem>>) target_semaphore(%100 : memref<!tpu.dma_semaphore, #tpu.memory_space<semaphore_mem>>)
    %c4_i32_68 = arith.constant 4 : i32
    %c0_i32_69 = arith.constant 0 : i32
    %c0_i32_70 = arith.constant 0 : i32
    %101 = tpu.memref_slice %arg2[%c0_i32_69, %c0_i32_70] : memref<128x128xf32, #tpu.memory_space<any>> -> memref<1x128xf32, #tpu.memory_space<any>>
    %c4_i32_71 = arith.constant 4 : i32
    %c0_i32_72 = arith.constant 0 : i32
    %102 = tpu.memref_slice %arg4[%c4_i32_71, %c0_i32_72] : memref<16x128xf32, #tpu.memory_space<vmem>> -> memref<1x128xf32, #tpu.memory_space<vmem>>
    %103 = tpu.memref_slice %arg5[%c4_i32_68] : memref<8x!tpu.dma_semaphore, #tpu.memory_space<semaphore_mem>> -> memref<1x!tpu.dma_semaphore, #tpu.memory_space<semaphore_mem>>
    %104 = tpu.memref_squeeze %103 : memref<1x!tpu.dma_semaphore, #tpu.memory_space<semaphore_mem>> -> memref<!tpu.dma_semaphore, #tpu.memory_space<semaphore_mem>>
    tpu.wait_dma2 semaphore(%104 : memref<!tpu.dma_semaphore, #tpu.memory_space<semaphore_mem>>) src(%101 : memref<1x128xf32, #tpu.memory_space<any>>) dst(%102 : memref<1x128xf32, #tpu.memory_space<vmem>>)
    %c12_i32 = arith.constant 12 : i32
    %105 = arith.addi %0, %c12_i32 : i32
    %106 = arith.index_cast %105 : i32 to index
    %107 = memref.load %arg1[%106] : memref<16xi32, #tpu.memory_space<smem>>
    %c4_i32_73 = arith.constant 4 : i32
    %c0_i32_74 = arith.constant 0 : i32
    %108 = tpu.memref_slice %arg2[%107, %c0_i32_74] : memref<128x128xf32, #tpu.memory_space<any>> -> memref<1x128xf32, #tpu.memory_space<any>>
    %c12_i32_75 = arith.constant 12 : i32
    %c0_i32_76 = arith.constant 0 : i32
    %109 = tpu.memref_slice %arg4[%c12_i32_75, %c0_i32_76] : memref<16x128xf32, #tpu.memory_space<vmem>> -> memref<1x128xf32, #tpu.memory_space<vmem>>
    %110 = tpu.memref_slice %arg5[%c4_i32_73] : memref<8x!tpu.dma_semaphore, #tpu.memory_space<semaphore_mem>> -> memref<1x!tpu.dma_semaphore, #tpu.memory_space<semaphore_mem>>
    %111 = tpu.memref_squeeze %110 : memref<1x!tpu.dma_semaphore, #tpu.memory_space<semaphore_mem>> -> memref<!tpu.dma_semaphore, #tpu.memory_space<semaphore_mem>>
    tpu.enqueue_dma source(%108 : memref<1x128xf32, #tpu.memory_space<any>>) target(%109 : memref<1x128xf32, #tpu.memory_space<vmem>>) target_semaphore(%111 : memref<!tpu.dma_semaphore, #tpu.memory_space<semaphore_mem>>)
    %c5_i32_77 = arith.constant 5 : i32
    %c0_i32_78 = arith.constant 0 : i32
    %c0_i32_79 = arith.constant 0 : i32
    %112 = tpu.memref_slice %arg2[%c0_i32_78, %c0_i32_79] : memref<128x128xf32, #tpu.memory_space<any>> -> memref<1x128xf32, #tpu.memory_space<any>>
    %c5_i32_80 = arith.constant 5 : i32
    %c0_i32_81 = arith.constant 0 : i32
    %113 = tpu.memref_slice %arg4[%c5_i32_80, %c0_i32_81] : memref<16x128xf32, #tpu.memory_space<vmem>> -> memref<1x128xf32, #tpu.memory_space<vmem>>
    %114 = tpu.memref_slice %arg5[%c5_i32_77] : memref<8x!tpu.dma_semaphore, #tpu.memory_space<semaphore_mem>> -> memref<1x!tpu.dma_semaphore, #tpu.memory_space<semaphore_mem>>
    %115 = tpu.memref_squeeze %114 : memref<1x!tpu.dma_semaphore, #tpu.memory_space<semaphore_mem>> -> memref<!tpu.dma_semaphore, #tpu.memory_space<semaphore_mem>>
    tpu.wait_dma2 semaphore(%115 : memref<!tpu.dma_semaphore, #tpu.memory_space<semaphore_mem>>) src(%112 : memref<1x128xf32, #tpu.memory_space<any>>) dst(%113 : memref<1x128xf32, #tpu.memory_space<vmem>>)
    %c13_i32 = arith.constant 13 : i32
    %116 = arith.addi %0, %c13_i32 : i32
    %117 = arith.index_cast %116 : i32 to index
    %118 = memref.load %arg1[%117] : memref<16xi32, #tpu.memory_space<smem>>
    %c5_i32_82 = arith.constant 5 : i32
    %c0_i32_83 = arith.constant 0 : i32
    %119 = tpu.memref_slice %arg2[%118, %c0_i32_83] : memref<128x128xf32, #tpu.memory_space<any>> -> memref<1x128xf32, #tpu.memory_space<any>>
    %c13_i32_84 = arith.constant 13 : i32
    %c0_i32_85 = arith.constant 0 : i32
    %120 = tpu.memref_slice %arg4[%c13_i32_84, %c0_i32_85] : memref<16x128xf32, #tpu.memory_space<vmem>> -> memref<1x128xf32, #tpu.memory_space<vmem>>
    %121 = tpu.memref_slice %arg5[%c5_i32_82] : memref<8x!tpu.dma_semaphore, #tpu.memory_space<semaphore_mem>> -> memref<1x!tpu.dma_semaphore, #tpu.memory_space<semaphore_mem>>
    %122 = tpu.memref_squeeze %121 : memref<1x!tpu.dma_semaphore, #tpu.memory_space<semaphore_mem>> -> memref<!tpu.dma_semaphore, #tpu.memory_space<semaphore_mem>>
    tpu.enqueue_dma source(%119 : memref<1x128xf32, #tpu.memory_space<any>>) target(%120 : memref<1x128xf32, #tpu.memory_space<vmem>>) target_semaphore(%122 : memref<!tpu.dma_semaphore, #tpu.memory_space<semaphore_mem>>)
    %c6_i32_86 = arith.constant 6 : i32
    %c0_i32_87 = arith.constant 0 : i32
    %c0_i32_88 = arith.constant 0 : i32
    %123 = tpu.memref_slice %arg2[%c0_i32_87, %c0_i32_88] : memref<128x128xf32, #tpu.memory_space<any>> -> memref<1x128xf32, #tpu.memory_space<any>>
    %c6_i32_89 = arith.constant 6 : i32
    %c0_i32_90 = arith.constant 0 : i32
    %124 = tpu.memref_slice %arg4[%c6_i32_89, %c0_i32_90] : memref<16x128xf32, #tpu.memory_space<vmem>> -> memref<1x128xf32, #tpu.memory_space<vmem>>
    %125 = tpu.memref_slice %arg5[%c6_i32_86] : memref<8x!tpu.dma_semaphore, #tpu.memory_space<semaphore_mem>> -> memref<1x!tpu.dma_semaphore, #tpu.memory_space<semaphore_mem>>
    %126 = tpu.memref_squeeze %125 : memref<1x!tpu.dma_semaphore, #tpu.memory_space<semaphore_mem>> -> memref<!tpu.dma_semaphore, #tpu.memory_space<semaphore_mem>>
    tpu.wait_dma2 semaphore(%126 : memref<!tpu.dma_semaphore, #tpu.memory_space<semaphore_mem>>) src(%123 : memref<1x128xf32, #tpu.memory_space<any>>) dst(%124 : memref<1x128xf32, #tpu.memory_space<vmem>>)
    %c14_i32 = arith.constant 14 : i32
    %127 = arith.addi %0, %c14_i32 : i32
    %128 = arith.index_cast %127 : i32 to index
    %129 = memref.load %arg1[%128] : memref<16xi32, #tpu.memory_space<smem>>
    %c6_i32_91 = arith.constant 6 : i32
    %c0_i32_92 = arith.constant 0 : i32
    %130 = tpu.memref_slice %arg2[%129, %c0_i32_92] : memref<128x128xf32, #tpu.memory_space<any>> -> memref<1x128xf32, #tpu.memory_space<any>>
    %c14_i32_93 = arith.constant 14 : i32
    %c0_i32_94 = arith.constant 0 : i32
    %131 = tpu.memref_slice %arg4[%c14_i32_93, %c0_i32_94] : memref<16x128xf32, #tpu.memory_space<vmem>> -> memref<1x128xf32, #tpu.memory_space<vmem>>
    %132 = tpu.memref_slice %arg5[%c6_i32_91] : memref<8x!tpu.dma_semaphore, #tpu.memory_space<semaphore_mem>> -> memref<1x!tpu.dma_semaphore, #tpu.memory_space<semaphore_mem>>
    %133 = tpu.memref_squeeze %132 : memref<1x!tpu.dma_semaphore, #tpu.memory_space<semaphore_mem>> -> memref<!tpu.dma_semaphore, #tpu.memory_space<semaphore_mem>>
    tpu.enqueue_dma source(%130 : memref<1x128xf32, #tpu.memory_space<any>>) target(%131 : memref<1x128xf32, #tpu.memory_space<vmem>>) target_semaphore(%133 : memref<!tpu.dma_semaphore, #tpu.memory_space<semaphore_mem>>)
    %c7_i32_95 = arith.constant 7 : i32
    %c0_i32_96 = arith.constant 0 : i32
    %c0_i32_97 = arith.constant 0 : i32
    %134 = tpu.memref_slice %arg2[%c0_i32_96, %c0_i32_97] : memref<128x128xf32, #tpu.memory_space<any>> -> memref<1x128xf32, #tpu.memory_space<any>>
    %c7_i32_98 = arith.constant 7 : i32
    %c0_i32_99 = arith.constant 0 : i32
    %135 = tpu.memref_slice %arg4[%c7_i32_98, %c0_i32_99] : memref<16x128xf32, #tpu.memory_space<vmem>> -> memref<1x128xf32, #tpu.memory_space<vmem>>
    %136 = tpu.memref_slice %arg5[%c7_i32_95] : memref<8x!tpu.dma_semaphore, #tpu.memory_space<semaphore_mem>> -> memref<1x!tpu.dma_semaphore, #tpu.memory_space<semaphore_mem>>
    %137 = tpu.memref_squeeze %136 : memref<1x!tpu.dma_semaphore, #tpu.memory_space<semaphore_mem>> -> memref<!tpu.dma_semaphore, #tpu.memory_space<semaphore_mem>>
    tpu.wait_dma2 semaphore(%137 : memref<!tpu.dma_semaphore, #tpu.memory_space<semaphore_mem>>) src(%134 : memref<1x128xf32, #tpu.memory_space<any>>) dst(%135 : memref<1x128xf32, #tpu.memory_space<vmem>>)
    %c15_i32 = arith.constant 15 : i32
    %138 = arith.addi %0, %c15_i32 : i32
    %139 = arith.index_cast %138 : i32 to index
    %140 = memref.load %arg1[%139] : memref<16xi32, #tpu.memory_space<smem>>
    %c7_i32_100 = arith.constant 7 : i32
    %c0_i32_101 = arith.constant 0 : i32
    %141 = tpu.memref_slice %arg2[%140, %c0_i32_101] : memref<128x128xf32, #tpu.memory_space<any>> -> memref<1x128xf32, #tpu.memory_space<any>>
    %c15_i32_102 = arith.constant 15 : i32
    %c0_i32_103 = arith.constant 0 : i32
    %142 = tpu.memref_slice %arg4[%c15_i32_102, %c0_i32_103] : memref<16x128xf32, #tpu.memory_space<vmem>> -> memref<1x128xf32, #tpu.memory_space<vmem>>
    %143 = tpu.memref_slice %arg5[%c7_i32_100] : memref<8x!tpu.dma_semaphore, #tpu.memory_space<semaphore_mem>> -> memref<1x!tpu.dma_semaphore, #tpu.memory_space<semaphore_mem>>
    %144 = tpu.memref_squeeze %143 : memref<1x!tpu.dma_semaphore, #tpu.memory_space<semaphore_mem>> -> memref<!tpu.dma_semaphore, #tpu.memory_space<semaphore_mem>>
    tpu.enqueue_dma source(%141 : memref<1x128xf32, #tpu.memory_space<any>>) target(%142 : memref<1x128xf32, #tpu.memory_space<vmem>>) target_semaphore(%144 : memref<!tpu.dma_semaphore, #tpu.memory_space<semaphore_mem>>)
    %c0_i32_104 = arith.constant 0 : i32
    %c0_i32_105 = arith.constant 0 : i32
    %c0_i32_106 = arith.constant 0 : i32
    %145 = tpu.memref_slice %arg2[%c0_i32_105, %c0_i32_106] : memref<128x128xf32, #tpu.memory_space<any>> -> memref<1x128xf32, #tpu.memory_space<any>>
    %c8_i32_107 = arith.constant 8 : i32
    %c0_i32_108 = arith.constant 0 : i32
    %146 = tpu.memref_slice %arg4[%c8_i32_107, %c0_i32_108] : memref<16x128xf32, #tpu.memory_space<vmem>> -> memref<1x128xf32, #tpu.memory_space<vmem>>
    %147 = tpu.memref_slice %arg5[%c0_i32_104] : memref<8x!tpu.dma_semaphore, #tpu.memory_space<semaphore_mem>> -> memref<1x!tpu.dma_semaphore, #tpu.memory_space<semaphore_mem>>
    %148 = tpu.memref_squeeze %147 : memref<1x!tpu.dma_semaphore, #tpu.memory_space<semaphore_mem>> -> memref<!tpu.dma_semaphore, #tpu.memory_space<semaphore_mem>>
    tpu.wait_dma2 semaphore(%148 : memref<!tpu.dma_semaphore, #tpu.memory_space<semaphore_mem>>) src(%145 : memref<1x128xf32, #tpu.memory_space<any>>) dst(%146 : memref<1x128xf32, #tpu.memory_space<vmem>>)
    %c1_i32_109 = arith.constant 1 : i32
    %c0_i32_110 = arith.constant 0 : i32
    %c0_i32_111 = arith.constant 0 : i32
    %149 = tpu.memref_slice %arg2[%c0_i32_110, %c0_i32_111] : memref<128x128xf32, #tpu.memory_space<any>> -> memref<1x128xf32, #tpu.memory_space<any>>
    %c9_i32_112 = arith.constant 9 : i32
    %c0_i32_113 = arith.constant 0 : i32
    %150 = tpu.memref_slice %arg4[%c9_i32_112, %c0_i32_113] : memref<16x128xf32, #tpu.memory_space<vmem>> -> memref<1x128xf32, #tpu.memory_space<vmem>>
    %151 = tpu.memref_slice %arg5[%c1_i32_109] : memref<8x!tpu.dma_semaphore, #tpu.memory_space<semaphore_mem>> -> memref<1x!tpu.dma_semaphore, #tpu.memory_space<semaphore_mem>>
    %152 = tpu.memref_squeeze %151 : memref<1x!tpu.dma_semaphore, #tpu.memory_space<semaphore_mem>> -> memref<!tpu.dma_semaphore, #tpu.memory_space<semaphore_mem>>
    tpu.wait_dma2 semaphore(%152 : memref<!tpu.dma_semaphore, #tpu.memory_space<semaphore_mem>>) src(%149 : memref<1x128xf32, #tpu.memory_space<any>>) dst(%150 : memref<1x128xf32, #tpu.memory_space<vmem>>)
    %c2_i32_114 = arith.constant 2 : i32
    %c0_i32_115 = arith.constant 0 : i32
    %c0_i32_116 = arith.constant 0 : i32
    %153 = tpu.memref_slice %arg2[%c0_i32_115, %c0_i32_116] : memref<128x128xf32, #tpu.memory_space<any>> -> memref<1x128xf32, #tpu.memory_space<any>>
    %c10_i32_117 = arith.constant 10 : i32
    %c0_i32_118 = arith.constant 0 : i32
    %154 = tpu.memref_slice %arg4[%c10_i32_117, %c0_i32_118] : memref<16x128xf32, #tpu.memory_space<vmem>> -> memref<1x128xf32, #tpu.memory_space<vmem>>
    %155 = tpu.memref_slice %arg5[%c2_i32_114] : memref<8x!tpu.dma_semaphore, #tpu.memory_space<semaphore_mem>> -> memref<1x!tpu.dma_semaphore, #tpu.memory_space<semaphore_mem>>
    %156 = tpu.memref_squeeze %155 : memref<1x!tpu.dma_semaphore, #tpu.memory_space<semaphore_mem>> -> memref<!tpu.dma_semaphore, #tpu.memory_space<semaphore_mem>>
    tpu.wait_dma2 semaphore(%156 : memref<!tpu.dma_semaphore, #tpu.memory_space<semaphore_mem>>) src(%153 : memref<1x128xf32, #tpu.memory_space<any>>) dst(%154 : memref<1x128xf32, #tpu.memory_space<vmem>>)
    %c3_i32_119 = arith.constant 3 : i32
    %c0_i32_120 = arith.constant 0 : i32
    %c0_i32_121 = arith.constant 0 : i32
    %157 = tpu.memref_slice %arg2[%c0_i32_120, %c0_i32_121] : memref<128x128xf32, #tpu.memory_space<any>> -> memref<1x128xf32, #tpu.memory_space<any>>
    %c11_i32_122 = arith.constant 11 : i32
    %c0_i32_123 = arith.constant 0 : i32
    %158 = tpu.memref_slice %arg4[%c11_i32_122, %c0_i32_123] : memref<16x128xf32, #tpu.memory_space<vmem>> -> memref<1x128xf32, #tpu.memory_space<vmem>>
    %159 = tpu.memref_slice %arg5[%c3_i32_119] : memref<8x!tpu.dma_semaphore, #tpu.memory_space<semaphore_mem>> -> memref<1x!tpu.dma_semaphore, #tpu.memory_space<semaphore_mem>>
    %160 = tpu.memref_squeeze %159 : memref<1x!tpu.dma_semaphore, #tpu.memory_space<semaphore_mem>> -> memref<!tpu.dma_semaphore, #tpu.memory_space<semaphore_mem>>
    tpu.wait_dma2 semaphore(%160 : memref<!tpu.dma_semaphore, #tpu.memory_space<semaphore_mem>>) src(%157 : memref<1x128xf32, #tpu.memory_space<any>>) dst(%158 : memref<1x128xf32, #tpu.memory_space<vmem>>)
    %c4_i32_124 = arith.constant 4 : i32
    %c0_i32_125 = arith.constant 0 : i32
    %c0_i32_126 = arith.constant 0 : i32
    %161 = tpu.memref_slice %arg2[%c0_i32_125, %c0_i32_126] : memref<128x128xf32, #tpu.memory_space<any>> -> memref<1x128xf32, #tpu.memory_space<any>>
    %c12_i32_127 = arith.constant 12 : i32
    %c0_i32_128 = arith.constant 0 : i32
    %162 = tpu.memref_slice %arg4[%c12_i32_127, %c0_i32_128] : memref<16x128xf32, #tpu.memory_space<vmem>> -> memref<1x128xf32, #tpu.memory_space<vmem>>
    %163 = tpu.memref_slice %arg5[%c4_i32_124] : memref<8x!tpu.dma_semaphore, #tpu.memory_space<semaphore_mem>> -> memref<1x!tpu.dma_semaphore, #tpu.memory_space<semaphore_mem>>
    %164 = tpu.memref_squeeze %163 : memref<1x!tpu.dma_semaphore, #tpu.memory_space<semaphore_mem>> -> memref<!tpu.dma_semaphore, #tpu.memory_space<semaphore_mem>>
    tpu.wait_dma2 semaphore(%164 : memref<!tpu.dma_semaphore, #tpu.memory_space<semaphore_mem>>) src(%161 : memref<1x128xf32, #tpu.memory_space<any>>) dst(%162 : memref<1x128xf32, #tpu.memory_space<vmem>>)
    %c5_i32_129 = arith.constant 5 : i32
    %c0_i32_130 = arith.constant 0 : i32
    %c0_i32_131 = arith.constant 0 : i32
    %165 = tpu.memref_slice %arg2[%c0_i32_130, %c0_i32_131] : memref<128x128xf32, #tpu.memory_space<any>> -> memref<1x128xf32, #tpu.memory_space<any>>
    %c13_i32_132 = arith.constant 13 : i32
    %c0_i32_133 = arith.constant 0 : i32
    %166 = tpu.memref_slice %arg4[%c13_i32_132, %c0_i32_133] : memref<16x128xf32, #tpu.memory_space<vmem>> -> memref<1x128xf32, #tpu.memory_space<vmem>>
    %167 = tpu.memref_slice %arg5[%c5_i32_129] : memref<8x!tpu.dma_semaphore, #tpu.memory_space<semaphore_mem>> -> memref<1x!tpu.dma_semaphore, #tpu.memory_space<semaphore_mem>>
    %168 = tpu.memref_squeeze %167 : memref<1x!tpu.dma_semaphore, #tpu.memory_space<semaphore_mem>> -> memref<!tpu.dma_semaphore, #tpu.memory_space<semaphore_mem>>
    tpu.wait_dma2 semaphore(%168 : memref<!tpu.dma_semaphore, #tpu.memory_space<semaphore_mem>>) src(%165 : memref<1x128xf32, #tpu.memory_space<any>>) dst(%166 : memref<1x128xf32, #tpu.memory_space<vmem>>)
    %c6_i32_134 = arith.constant 6 : i32
    %c0_i32_135 = arith.constant 0 : i32
    %c0_i32_136 = arith.constant 0 : i32
    %169 = tpu.memref_slice %arg2[%c0_i32_135, %c0_i32_136] : memref<128x128xf32, #tpu.memory_space<any>> -> memref<1x128xf32, #tpu.memory_space<any>>
    %c14_i32_137 = arith.constant 14 : i32
    %c0_i32_138 = arith.constant 0 : i32
    %170 = tpu.memref_slice %arg4[%c14_i32_137, %c0_i32_138] : memref<16x128xf32, #tpu.memory_space<vmem>> -> memref<1x128xf32, #tpu.memory_space<vmem>>
    %171 = tpu.memref_slice %arg5[%c6_i32_134] : memref<8x!tpu.dma_semaphore, #tpu.memory_space<semaphore_mem>> -> memref<1x!tpu.dma_semaphore, #tpu.memory_space<semaphore_mem>>
    %172 = tpu.memref_squeeze %171 : memref<1x!tpu.dma_semaphore, #tpu.memory_space<semaphore_mem>> -> memref<!tpu.dma_semaphore, #tpu.memory_space<semaphore_mem>>
    tpu.wait_dma2 semaphore(%172 : memref<!tpu.dma_semaphore, #tpu.memory_space<semaphore_mem>>) src(%169 : memref<1x128xf32, #tpu.memory_space<any>>) dst(%170 : memref<1x128xf32, #tpu.memory_space<vmem>>)
    %c7_i32_139 = arith.constant 7 : i32
    %c0_i32_140 = arith.constant 0 : i32
    %c0_i32_141 = arith.constant 0 : i32
    %173 = tpu.memref_slice %arg2[%c0_i32_140, %c0_i32_141] : memref<128x128xf32, #tpu.memory_space<any>> -> memref<1x128xf32, #tpu.memory_space<any>>
    %c15_i32_142 = arith.constant 15 : i32
    %c0_i32_143 = arith.constant 0 : i32
    %174 = tpu.memref_slice %arg4[%c15_i32_142, %c0_i32_143] : memref<16x128xf32, #tpu.memory_space<vmem>> -> memref<1x128xf32, #tpu.memory_space<vmem>>
    %175 = tpu.memref_slice %arg5[%c7_i32_139] : memref<8x!tpu.dma_semaphore, #tpu.memory_space<semaphore_mem>> -> memref<1x!tpu.dma_semaphore, #tpu.memory_space<semaphore_mem>>
    %176 = tpu.memref_squeeze %175 : memref<1x!tpu.dma_semaphore, #tpu.memory_space<semaphore_mem>> -> memref<!tpu.dma_semaphore, #tpu.memory_space<semaphore_mem>>
    tpu.wait_dma2 semaphore(%176 : memref<!tpu.dma_semaphore, #tpu.memory_space<semaphore_mem>>) src(%173 : memref<1x128xf32, #tpu.memory_space<any>>) dst(%174 : memref<1x128xf32, #tpu.memory_space<vmem>>)
    %c0 = arith.constant 0 : index
    %c0_144 = arith.constant 0 : index
    %177 = vector.load %arg4[%c0, %c0_144] : memref<16x128xf32, #tpu.memory_space<vmem>>, vector<16x128xf32>
    %c0_145 = arith.constant 0 : index
    %c0_146 = arith.constant 0 : index
    %178 = vector.load %arg3[%c0_145, %c0_146] : memref<16x128xf32, #tpu.memory_space<vmem>>, vector<16x128xf32>
    tpu.vector_store %arg3[%c0_145, %c0_146], %177 {strides = array<i32>} : memref<16x128xf32, #tpu.memory_space<vmem>>, vector<16x128xf32>,
    return
  }
  func.func @transform_1(%arg0: i32, %arg1: memref<16xi32, #tpu.memory_space<smem>>) -> (i32, i32) {
    %c0_i32 = arith.constant 0 : i32
    %c0_i32_0 = arith.constant 0 : i32
    return %arg0, %c0_i32 : i32, i32
  }
}

</mosaic_0001>

<llo_original>
// kernel: tpu_custom_call.1
$region0: #{tpu_custom_call.1}
  #allocation0 [shape = 'u32[]', space=smem, size = 0x4, offset = 0x4, fixed_abs, tag = 'smem constant byte address 0x4 - core index']
  #allocation1 [shape = 'u32[144,128]{1,0:T(1,128)}', space=vmem, size = 0x12000, scoped, tag = 'internal scratch']
  #allocation2 [shape = 'f32[16,128]{1,0:T(8,128)}', space=vmem, size = 0x2000, scoped, tag = 'scratch operand']
  #allocation3 [shape = 's32[8]{0}', space=sflag, size = 0x20, scoped, tag = 'scratch operand']
  #allocation4 [shape = 's32[1]{0}', space=sflag, size = 0x4, scoped, tag = 'scoped memory for tpu_custom_call.1']
  #allocation5 [shape = 'u8[512]{0}', space=smem, size = 0x200, scoped, tag = 'prefetched SMEM operand 0']
  #allocation8 [shape = 's32[]', space=sflag, size = 0x4, offset = 0, fixed_abs, tag = 'sflag constant byte address 0x0 - dummy sync flag']
  #allocation9 [shape = 's32[]', space=sflag, size = 0x4, offset = 0, fixed_abs, tag = 'sflag constant byte address 0x0 - dummy sync flag']
  #allocation10 [shape = 'u32[]', space=smem, size = 0x4, offset = 0x44, fixed_abs, tag = 'smem constant byte address 0x44 - assertion arg 0']
  #allocation11 [shape = 'u32[]', space=smem, size = 0x4, offset = 0x48, fixed_abs, tag = 'smem constant byte address 0x48 - assertion arg 1']
  #allocation12 [shape = 's32[]', space=sflag, size = 0x4, offset = 0, fixed_abs, tag = 'sflag constant byte address 0x0 - dummy sync flag']
  #allocation13 [shape = 's32[]', space=sflag, size = 0x4, offset = 0, fixed_abs, tag = 'sflag constant byte address 0x0 - dummy sync flag']
  #allocation14 [shape = 's32[]', space=sflag, size = 0x4, offset = 0, fixed_abs, tag = 'sflag constant byte address 0x0 - dummy sync flag']
  #allocation15 [shape = 's32[]', space=sflag, size = 0x4, offset = 0, fixed_abs, tag = 'sflag constant byte address 0x0 - dummy sync flag']
  #allocation16 [shape = 's32[]', space=sflag, size = 0x4, offset = 0, fixed_abs, tag = 'sflag constant byte address 0x0 - dummy sync flag']
  #allocation17 [shape = 's32[]', space=sflag, size = 0x4, offset = 0, fixed_abs, tag = 'sflag constant byte address 0x0 - dummy sync flag']
  #allocation18 [shape = 's32[]', space=sflag, size = 0x4, offset = 0, fixed_abs, tag = 'sflag constant byte address 0x0 - dummy sync flag']
  #allocation19 [shape = 's32[]', space=sflag, size = 0x4, offset = 0, fixed_abs, tag = 'sflag constant byte address 0x0 - dummy sync flag']
  #allocation20 [shape = 's32[]', space=sflag, size = 0x4, offset = 0, fixed_abs, tag = 'sflag constant byte address 0x0 - dummy sync flag']
  #allocation21 [shape = 's32[]', space=sflag, size = 0x4, offset = 0, fixed_abs, tag = 'sflag constant byte address 0x0 - dummy sync flag']
  #allocation22 [shape = 's32[]', space=sflag, size = 0x4, offset = 0, fixed_abs, tag = 'sflag constant byte address 0x0 - dummy sync flag']
  #allocation23 [shape = 's32[]', space=sflag, size = 0x4, offset = 0, fixed_abs, tag = 'sflag constant byte address 0x0 - dummy sync flag']
  #allocation24 [shape = 's32[]', space=sflag, size = 0x4, offset = 0, fixed_abs, tag = 'sflag constant byte address 0x0 - dummy sync flag']
  #allocation25 [shape = 's32[]', space=sflag, size = 0x4, offset = 0, fixed_abs, tag = 'sflag constant byte address 0x0 - dummy sync flag']
  #allocation26 [shape = 's32[]', space=sflag, size = 0x4, offset = 0, fixed_abs, tag = 'sflag constant byte address 0x0 - dummy sync flag']
  #allocation27 [shape = 's32[]', space=sflag, size = 0x4, offset = 0, fixed_abs, tag = 'sflag constant byte address 0x0 - dummy sync flag']
  #allocation28 [shape = 's32[]', space=sflag, size = 0x4, offset = 0, fixed_abs, tag = 'sflag constant byte address 0x0 - dummy sync flag']
  #allocation29 [shape = 's32[]', space=sflag, size = 0x4, offset = 0, fixed_abs, tag = 'sflag constant byte address 0x0 - dummy sync flag']
  #allocation30 [shape = 's32[]', space=sflag, size = 0x4, offset = 0, fixed_abs, tag = 'sflag constant byte address 0x0 - dummy sync flag']
  #allocation31 [shape = 's32[]', space=sflag, size = 0x4, offset = 0, fixed_abs, tag = 'sflag constant byte address 0x0 - dummy sync flag']
  #allocation32 [shape = 's32[]', space=sflag, size = 0x4, offset = 0, fixed_abs, tag = 'sflag constant byte address 0x0 - dummy sync flag']
  #allocation33 [shape = 's32[]', space=sflag, size = 0x4, offset = 0, fixed_abs, tag = 'sflag constant byte address 0x0 - dummy sync flag']
  #allocation34 [shape = 's32[]', space=sflag, size = 0x4, offset = 0, fixed_abs, tag = 'sflag constant byte address 0x0 - dummy sync flag']
  #allocation35 [shape = 's32[]', space=sflag, size = 0x4, offset = 0, fixed_abs, tag = 'sflag constant byte address 0x0 - dummy sync flag']
  #allocation36 [shape = 's32[]', space=sflag, size = 0x4, offset = 0, fixed_abs, tag = 'sflag constant byte address 0x0 - dummy sync flag']
  #allocation37 [shape = 's32[]', space=sflag, size = 0x4, offset = 0, fixed_abs, tag = 'sflag constant byte address 0x0 - dummy sync flag']
  #allocation38 [shape = 's32[]', space=sflag, size = 0x4, offset = 0, fixed_abs, tag = 'sflag constant byte address 0x0 - dummy sync flag']
  #allocation39 [shape = 's32[]', space=sflag, size = 0x4, offset = 0, fixed_abs, tag = 'sflag constant byte address 0x0 - dummy sync flag']
  #allocation40 [shape = 's32[]', space=sflag, size = 0x4, offset = 0, fixed_abs, tag = 'sflag constant byte address 0x0 - dummy sync flag']
  #allocation41 [shape = 's32[]', space=sflag, size = 0x4, offset = 0, fixed_abs, tag = 'sflag constant byte address 0x0 - dummy sync flag']
  %s0 = inlined_call_operand.hbm [shape: s32[16], index: 0, kind: input, shape index: {}]
  %s1 = inlined_call_operand.hbm [shape: f32[128,128], index: 1, kind: input, shape index: {}]
  %s2 = inlined_call_operand.hbm [shape: f32[16,128], index: 2, kind: output, shape index: {}]
  %s3 = sld [smem:[#allocation0]]
  $region74: #{tpu_custom_call.1} parent=0
    _
  %s5 = ssub.s32 1, %s3
  %s6 = scalar_select 0, %s5, %s3
  %8 = dma.hbm_to_smem %s0, 16, [#allocation5], [#allocation4]
  %9 = dma.done [#allocation4], 16
  %10 = sfence
  $region1: #{tpu_custom_call.1} parent=0
    #allocation6 [shape = 'u8[8192]{0}', space=vmem, size = 0x2000, scoped, tag = 'output window, operand 0, single buffered']
    #allocation7 [shape = 's32[1]{0}', space=sflag, size = 0x4, scoped, tag = 'scoped memory for tpu_custom_call.1']
    %11 = vsyncpa [#allocation7], 0
    %s12 = smul.u32 0, 16
    %s13 = sld [smem:[#allocation5 + %s12]]
    %s14 = smul.addr %s13, 16
    %s15 = scalar_lea.hbm %s1, %s14
    // Predicated region
    $region2: #{tpu_custom_call.1} parent=1 // pred_check
      _
    $region3: #{tpu_custom_call.1} parent=1 // pred_check_branch
      %17 = sbr.rel target = $region5
    $region4: #{tpu_custom_call.1} parent=1 // pred_region
      %18 = sst [smem:[#allocation10]] [#allocation9]
      %19 = sst [smem:[#allocation11]] [#allocation8]
    $region5: #{tpu_custom_call.1} parent=1 // pred_fallthru
      _
    %21 = shalt.err (0)
    %s23 = sshll.u32 [#allocation2], 4
    %s24 = int_to_ptr.vmem [resolvable:$true] %s23
    %26 = dma.hbm_to_vmem [thread:$0]  %s15, 16, %s24, [#allocation3]
    %s27 = sadd.s32 %s12, 1
    %s28 = sld [smem:[#allocation5 + %s27]]
    %s29 = smul.addr %s28, 16
    %s30 = scalar_lea.hbm %s1, %s29
    %s31 = scalar_lea.vmem [#allocation2], 1
    %s32 = scalar_lea.sflag [#allocation3], 1
    // Predicated region
    $region6: #{tpu_custom_call.1} parent=1 // pred_check
      _
    $region7: #{tpu_custom_call.1} parent=1 // pred_check_branch
      %34 = sbr.rel target = $region9
    $region8: #{tpu_custom_call.1} parent=1 // pred_region
      %35 = sst [smem:[#allocation10]] [#allocation13]
      %36 = sst [smem:[#allocation11]] [#allocation12]
    $region9: #{tpu_custom_call.1} parent=1 // pred_fallthru
      _
    %38 = shalt.err (0)
    %s40 = sshll.u32 %s31, 4
    %s41 = int_to_ptr.vmem [resolvable:$true] %s40
    %43 = dma.hbm_to_vmem [thread:$0]  %s30, 16, %s41, %s32
    %s44 = sadd.s32 %s12, 2
    %s45 = sld [smem:[#allocation5 + %s44]]
    %s46 = smul.addr %s45, 16
    %s47 = scalar_lea.hbm %s1, %s46
    %s48 = scalar_lea.vmem [#allocation2], 2
    %s49 = scalar_lea.sflag [#allocation3], 2
    // Predicated region
    $region10: #{tpu_custom_call.1} parent=1 // pred_check
      _
    $region11: #{tpu_custom_call.1} parent=1 // pred_check_branch
      %51 = sbr.rel target = $region13
    $region12: #{tpu_custom_call.1} parent=1 // pred_region
      %52 = sst [smem:[#allocation10]] [#allocation15]
      %53 = sst [smem:[#allocation11]] [#allocation14]
    $region13: #{tpu_custom_call.1} parent=1 // pred_fallthru
      _
    %55 = shalt.err (0)
    %s57 = sshll.u32 %s48, 4
    %s58 = int_to_ptr.vmem [resolvable:$true] %s57
    %60 = dma.hbm_to_vmem [thread:$0]  %s47, 16, %s58, %s49
    %s61 = sadd.s32 %s12, 3
    %s62 = sld [smem:[#allocation5 + %s61]]
    %s63 = smul.addr %s62, 16
    %s64 = scalar_lea.hbm %s1, %s63
    %s65 = scalar_lea.vmem [#allocation2], 3
    %s66 = scalar_lea.sflag [#allocation3], 3
    // Predicated region
    $region14: #{tpu_custom_call.1} parent=1 // pred_check
      _
    $region15: #{tpu_custom_call.1} parent=1 // pred_check_branch
      %68 = sbr.rel target = $region17
    $region16: #{tpu_custom_call.1} parent=1 // pred_region
      %69 = sst [smem:[#allocation10]] [#allocation17]
      %70 = sst [smem:[#allocation11]] [#allocation16]
    $region17: #{tpu_custom_call.1} parent=1 // pred_fallthru
      _
    %72 = shalt.err (0)
    %s74 = sshll.u32 %s65, 4
    %s75 = int_to_ptr.vmem [resolvable:$true] %s74
    %77 = dma.hbm_to_vmem [thread:$0]  %s64, 16, %s75, %s66
    %s78 = sadd.s32 %s12, 4
    %s79 = sld [smem:[#allocation5 + %s78]]
    %s80 = smul.addr %s79, 16
    %s81 = scalar_lea.hbm %s1, %s80
    %s82 = scalar_lea.vmem [#allocation2], 4
    %s83 = scalar_lea.sflag [#allocation3], 4
    // Predicated region
    $region18: #{tpu_custom_call.1} parent=1 // pred_check
      _
    $region19: #{tpu_custom_call.1} parent=1 // pred_check_branch
      %85 = sbr.rel target = $region21
    $region20: #{tpu_custom_call.1} parent=1 // pred_region
      %86 = sst [smem:[#allocation10]] [#allocation19]
      %87 = sst [smem:[#allocation11]] [#allocation18]
    $region21: #{tpu_custom_call.1} parent=1 // pred_fallthru
      _
    %89 = shalt.err (0)
    %s91 = sshll.u32 %s82, 4
    %s92 = int_to_ptr.vmem [resolvable:$true] %s91
    %94 = dma.hbm_to_vmem [thread:$0]  %s81, 16, %s92, %s83
    %s95 = sadd.s32 %s12, 5
    %s96 = sld [smem:[#allocation5 + %s95]]
    %s97 = smul.addr %s96, 16
    %s98 = scalar_lea.hbm %s1, %s97
    %s99 = scalar_lea.vmem [#allocation2], 5
    %s100 = scalar_lea.sflag [#allocation3], 5
    // Predicated region
    $region22: #{tpu_custom_call.1} parent=1 // pred_check
      _
    $region23: #{tpu_custom_call.1} parent=1 // pred_check_branch
      %102 = sbr.rel target = $region25
    $region24: #{tpu_custom_call.1} parent=1 // pred_region
      %103 = sst [smem:[#allocation10]] [#allocation21]
      %104 = sst [smem:[#allocation11]] [#allocation20]
    $region25: #{tpu_custom_call.1} parent=1 // pred_fallthru
      _
    %106 = shalt.err (0)
    %s108 = sshll.u32 %s99, 4
    %s109 = int_to_ptr.vmem [resolvable:$true] %s108
    %111 = dma.hbm_to_vmem [thread:$0]  %s98, 16, %s109, %s100
    %s112 = sadd.s32 %s12, 6
    %s113 = sld [smem:[#allocation5 + %s112]]
    %s114 = smul.addr %s113, 16
    %s115 = scalar_lea.hbm %s1, %s114
    %s116 = scalar_lea.vmem [#allocation2], 6
    %s117 = scalar_lea.sflag [#allocation3], 6
    // Predicated region
    $region26: #{tpu_custom_call.1} parent=1 // pred_check
      _
    $region27: #{tpu_custom_call.1} parent=1 // pred_check_branch
      %119 = sbr.rel target = $region29
    $region28: #{tpu_custom_call.1} parent=1 // pred_region
      %120 = sst [smem:[#allocation10]] [#allocation23]
      %121 = sst [smem:[#allocation11]] [#allocation22]
    $region29: #{tpu_custom_call.1} parent=1 // pred_fallthru
      _
    %123 = shalt.err (0)
    %s125 = sshll.u32 %s116, 4
    %s126 = int_to_ptr.vmem [resolvable:$true] %s125
    %128 = dma.hbm_to_vmem [thread:$0]  %s115, 16, %s126, %s117
    %s129 = sadd.s32 %s12, 7
    %s130 = sld [smem:[#allocation5 + %s129]]
    %s131 = smul.addr %s130, 16
    %s132 = scalar_lea.hbm %s1, %s131
    %s133 = scalar_lea.vmem [#allocation2], 7
    %s134 = scalar_lea.sflag [#allocation3], 7
    // Predicated region
    $region30: #{tpu_custom_call.1} parent=1 // pred_check
      _
    $region31: #{tpu_custom_call.1} parent=1 // pred_check_branch
      %136 = sbr.rel target = $region33
    $region32: #{tpu_custom_call.1} parent=1 // pred_region
      %137 = sst [smem:[#allocation10]] [#allocation25]
      %138 = sst [smem:[#allocation11]] [#allocation24]
    $region33: #{tpu_custom_call.1} parent=1 // pred_fallthru
      _
    %140 = shalt.err (0)
    %s142 = sshll.u32 %s133, 4
    %s143 = int_to_ptr.vmem [resolvable:$true] %s142
    %145 = dma.hbm_to_vmem [thread:$0]  %s132, 16, %s143, %s134
    %s146 = smul.u32 1, 1
    %s147 = sshll.u32 %s146, 4
    %148 = dma.done [#allocation3], %s147
    %s149 = sadd.s32 %s12, 8
    %s150 = sld [smem:[#allocation5 + %s149]]
    %s151 = smul.addr %s150, 16
    %s152 = scalar_lea.hbm %s1, %s151
    %s153 = scalar_lea.vmem [#allocation2], 8
    // Predicated region
    $region34: #{tpu_custom_call.1} parent=1 // pred_check
      _
    $region35: #{tpu_custom_call.1} parent=1 // pred_check_branch
      %155 = sbr.rel target = $region37
    $region36: #{tpu_custom_call.1} parent=1 // pred_region
      %156 = sst [smem:[#allocation10]] [#allocation27]
      %157 = sst [smem:[#allocation11]] [#allocation26]
    $region37: #{tpu_custom_call.1} parent=1 // pred_fallthru
      _
    %159 = shalt.err (0)
    %s161 = sshll.u32 %s153, 4
    %s162 = int_to_ptr.vmem [resolvable:$true] %s161
    %164 = dma.hbm_to_vmem [thread:$0]  %s152, 16, %s162, [#allocation3]
    %s165 = sshll.u32 %s146, 4
    %166 = dma.done %s32, %s165
    %s167 = sadd.s32 %s12, 9
    %s168 = sld [smem:[#allocation5 + %s167]]
    %s169 = smul.addr %s168, 16
    %s170 = scalar_lea.hbm %s1, %s169
    %s171 = scalar_lea.vmem [#allocation2], 9
    // Predicated region
    $region38: #{tpu_custom_call.1} parent=1 // pred_check
      _
    $region39: #{tpu_custom_call.1} parent=1 // pred_check_branch
      %173 = sbr.rel target = $region41
    $region40: #{tpu_custom_call.1} parent=1 // pred_region
      %174 = sst [smem:[#allocation10]] [#allocation29]
      %175 = sst [smem:[#allocation11]] [#allocation28]
    $region41: #{tpu_custom_call.1} parent=1 // pred_fallthru
      _
    %177 = shalt.err (0)
    %s179 = sshll.u32 %s171, 4
    %s180 = int_to_ptr.vmem [resolvable:$true] %s179
    %182 = dma.hbm_to_vmem [thread:$0]  %s170, 16, %s180, %s32
    %s183 = sshll.u32 %s146, 4
    %184 = dma.done %s49, %s183
    %s185 = sadd.s32 %s12, 10
    %s186 = sld [smem:[#allocation5 + %s185]]
    %s187 = smul.addr %s186, 16
    %s188 = scalar_lea.hbm %s1, %s187
    %s189 = scalar_lea.vmem [#allocation2], 10
    // Predicated region
    $region42: #{tpu_custom_call.1} parent=1 // pred_check
      _
    $region43: #{tpu_custom_call.1} parent=1 // pred_check_branch
      %191 = sbr.rel target = $region45
    $region44: #{tpu_custom_call.1} parent=1 // pred_region
      %192 = sst [smem:[#allocation10]] [#allocation31]
      %193 = sst [smem:[#allocation11]] [#allocation30]
    $region45: #{tpu_custom_call.1} parent=1 // pred_fallthru
      _
    %195 = shalt.err (0)
    %s197 = sshll.u32 %s189, 4
    %s198 = int_to_ptr.vmem [resolvable:$true] %s197
    %200 = dma.hbm_to_vmem [thread:$0]  %s188, 16, %s198, %s49
    %s201 = sshll.u32 %s146, 4
    %202 = dma.done %s66, %s201
    %s203 = sadd.s32 %s12, 11
    %s204 = sld [smem:[#allocation5 + %s203]]
    %s205 = smul.addr %s204, 16
    %s206 = scalar_lea.hbm %s1, %s205
    %s207 = scalar_lea.vmem [#allocation2], 11
    // Predicated region
    $region46: #{tpu_custom_call.1} parent=1 // pred_check
      _
    $region47: #{tpu_custom_call.1} parent=1 // pred_check_branch
      %209 = sbr.rel target = $region49
    $region48: #{tpu_custom_call.1} parent=1 // pred_region
      %210 = sst [smem:[#allocation10]] [#allocation33]
      %211 = sst [smem:[#allocation11]] [#allocation32]
    $region49: #{tpu_custom_call.1} parent=1 // pred_fallthru
      _
    %213 = shalt.err (0)
    %s215 = sshll.u32 %s207, 4
    %s216 = int_to_ptr.vmem [resolvable:$true] %s215
    %218 = dma.hbm_to_vmem [thread:$0]  %s206, 16, %s216, %s66
    %s219 = sshll.u32 %s146, 4
    %220 = dma.done %s83, %s219
    %s221 = sadd.s32 %s12, 12
    %s222 = sld [smem:[#allocation5 + %s221]]
    %s223 = smul.addr %s222, 16
    %s224 = scalar_lea.hbm %s1, %s223
    %s225 = scalar_lea.vmem [#allocation2], 12
    // Predicated region
    $region50: #{tpu_custom_call.1} parent=1 // pred_check
      _
    $region51: #{tpu_custom_call.1} parent=1 // pred_check_branch
      %227 = sbr.rel target = $region53
    $region52: #{tpu_custom_call.1} parent=1 // pred_region
      %228 = sst [smem:[#allocation10]] [#allocation35]
      %229 = sst [smem:[#allocation11]] [#allocation34]
    $region53: #{tpu_custom_call.1} parent=1 // pred_fallthru
      _
    %231 = shalt.err (0)
    %s233 = sshll.u32 %s225, 4
    %s234 = int_to_ptr.vmem [resolvable:$true] %s233
    %236 = dma.hbm_to_vmem [thread:$0]  %s224, 16, %s234, %s83
    %s237 = sshll.u32 %s146, 4
    %238 = dma.done %s100, %s237
    %s239 = sadd.s32 %s12, 13
    %s240 = sld [smem:[#allocation5 + %s239]]
    %s241 = smul.addr %s240, 16
    %s242 = scalar_lea.hbm %s1, %s241
    %s243 = scalar_lea.vmem [#allocation2], 13
    // Predicated region
    $region54: #{tpu_custom_call.1} parent=1 // pred_check
      _
    $region55: #{tpu_custom_call.1} parent=1 // pred_check_branch
      %245 = sbr.rel target = $region57
    $region56: #{tpu_custom_call.1} parent=1 // pred_region
      %246 = sst [smem:[#allocation10]] [#allocation37]
      %247 = sst [smem:[#allocation11]] [#allocation36]
    $region57: #{tpu_custom_call.1} parent=1 // pred_fallthru
      _
    %249 = shalt.err (0)
    %s251 = sshll.u32 %s243, 4
    %s252 = int_to_ptr.vmem [resolvable:$true] %s251
    %254 = dma.hbm_to_vmem [thread:$0]  %s242, 16, %s252, %s100
    %s255 = sshll.u32 %s146, 4
    %256 = dma.done %s117, %s255
    %s257 = sadd.s32 %s12, 14
    %s258 = sld [smem:[#allocation5 + %s257]]
    %s259 = smul.addr %s258, 16
    %s260 = scalar_lea.hbm %s1, %s259
    %s261 = scalar_lea.vmem [#allocation2], 14
    // Predicated region
    $region58: #{tpu_custom_call.1} parent=1 // pred_check
      _
    $region59: #{tpu_custom_call.1} parent=1 // pred_check_branch
      %263 = sbr.rel target = $region61
    $region60: #{tpu_custom_call.1} parent=1 // pred_region
      %264 = sst [smem:[#allocation10]] [#allocation39]
      %265 = sst [smem:[#allocation11]] [#allocation38]
    $region61: #{tpu_custom_call.1} parent=1 // pred_fallthru
      _
    %267 = shalt.err (0)
    %s269 = sshll.u32 %s261, 4
    %s270 = int_to_ptr.vmem [resolvable:$true] %s269
    %272 = dma.hbm_to_vmem [thread:$0]  %s260, 16, %s270, %s117
    %s273 = sshll.u32 %s146, 4
    %274 = dma.done %s134, %s273
    %s275 = sadd.s32 %s12, 15
    %s276 = sld [smem:[#allocation5 + %s275]]
    %s277 = smul.addr %s276, 16
    %s278 = scalar_lea.hbm %s1, %s277
    %s279 = scalar_lea.vmem [#allocation2], 15
    // Predicated region
    $region62: #{tpu_custom_call.1} parent=1 // pred_check
      _
    $region63: #{tpu_custom_call.1} parent=1 // pred_check_branch
      %281 = sbr.rel target = $region65
    $region64: #{tpu_custom_call.1} parent=1 // pred_region
      %282 = sst [smem:[#allocation10]] [#allocation41]
      %283 = sst [smem:[#allocation11]] [#allocation40]
    $region65: #{tpu_custom_call.1} parent=1 // pred_fallthru
      _
    %285 = shalt.err (0)
    %s287 = sshll.u32 %s279, 4
    %s288 = int_to_ptr.vmem [resolvable:$true] %s287
    %290 = dma.hbm_to_vmem [thread:$0]  %s278, 16, %s288, %s134
    %s291 = sshll.u32 %s146, 4
    %292 = dma.done [#allocation3], %s291
    %s293 = sshll.u32 %s146, 4
    %294 = dma.done %s32, %s293
    %s295 = sshll.u32 %s146, 4
    %296 = dma.done %s49, %s295
    %s297 = sshll.u32 %s146, 4
    %298 = dma.done %s66, %s297
    %s299 = sshll.u32 %s146, 4
    %300 = dma.done %s83, %s299
    %s301 = sshll.u32 %s146, 4
    %302 = dma.done %s100, %s301
    %s303 = sshll.u32 %s146, 4
    %304 = dma.done %s117, %s303
    %s305 = sshll.u32 %s146, 4
    %306 = dma.done %s134, %s305
    %v307 = vld [vmem:[#allocation2] sm:$0xff]
    %v308 = vld [vmem:[#allocation2 + $0x8] sm:$0xff]
    %309 = vst [vmem:[#allocation6] sm:$0xff] %v307
    %310 = vst [vmem:[#allocation6 + $0x8] sm:$0xff] %v308
    // Predicated region
    $region66: #{tpu_custom_call.1} parent=1 // pred_check
      _
    $region67: #{tpu_custom_call.1} parent=1 // pred_check_branch
      %312 = sbr.rel (0) target = $region69
    $region68: #{tpu_custom_call.1} parent=1 // pred_region
      %s314 = ssub.s32 256, 256
      %315 = vsyncadd [#allocation7], %s314
      %s316 = sshll.u32 [#allocation6], 4
      %s317 = int_to_ptr.vmem [resolvable:$true] %s316
      %322 = dma.vmem_to_hbm [thread:$0]  %s317, 256, %s2, [#allocation7], 128, 128, 8
    $region69: #{tpu_custom_call.1} parent=1 // pred_fallthru
      _
    // Predicated region
    $region70: #{tpu_custom_call.1} parent=1 // pred_check
      _
    $region71: #{tpu_custom_call.1} parent=1 // pred_check_branch
      %324 = sbr.rel (0) target = $region73
    $region72: #{tpu_custom_call.1} parent=1 // pred_region
      %325 = dma.done [#allocation7], 256
    $region73: #{tpu_custom_call.1} parent=1 // pred_fallthru
      _
    %326 = vsyncpa [#allocation7], 1
  %327 = vsyncmov [#allocation3]
  %s328 = vpop.sfrf %327
  %p329 = scmp.eq.s32.totalorder %s328, 0
  %p330 = pneg %p329
  %332 = shalt.err (%p330)
  %s333 = scalar_lea.sflag [#allocation3], 1
  %334 = vsyncmov %s333
  %s335 = vpop.sfrf %334
  %p336 = scmp.eq.s32.totalorder %s335, 0
  %p337 = pneg %p336
  %339 = shalt.err (%p337)
  %s340 = scalar_lea.sflag [#allocation3], 2
  %341 = vsyncmov %s340
  %s342 = vpop.sfrf %341
  %p343 = scmp.eq.s32.totalorder %s342, 0
  %p344 = pneg %p343
  %346 = shalt.err (%p344)
  %s347 = scalar_lea.sflag [#allocation3], 3
  %348 = vsyncmov %s347
  %s349 = vpop.sfrf %348
  %p350 = scmp.eq.s32.totalorder %s349, 0
  %p351 = pneg %p350
  %353 = shalt.err (%p351)
  %s354 = scalar_lea.sflag [#allocation3], 4
  %355 = vsyncmov %s354
  %s356 = vpop.sfrf %355
  %p357 = scmp.eq.s32.totalorder %s356, 0
  %p358 = pneg %p357
  %360 = shalt.err (%p358)
  %s361 = scalar_lea.sflag [#allocation3], 5
  %362 = vsyncmov %s361
  %s363 = vpop.sfrf %362
  %p364 = scmp.eq.s32.totalorder %s363, 0
  %p365 = pneg %p364
  %367 = shalt.err (%p365)
  %s368 = scalar_lea.sflag [#allocation3], 6
  %369 = vsyncmov %s368
  %s370 = vpop.sfrf %369
  %p371 = scmp.eq.s32.totalorder %s370, 0
  %p372 = pneg %p371
  %374 = shalt.err (%p372)
  %s375 = scalar_lea.sflag [#allocation3], 7
  %376 = vsyncmov %s375
  %s377 = vpop.sfrf %376
  %p378 = scmp.eq.s32.totalorder %s377, 0
  %p379 = pneg %p378
  %381 = shalt.err (%p379)

</llo_original>
